<compile_context>
chip_gen: v5e
topology: v5e:2x2
jax: 0.10.0
libtpu: 0.0.40
codegen_flags: <defaults>
</compile_context>

<pallas_src>
import jax
import jax.numpy as jnp
from jax.experimental import pallas as pl
from jax.experimental.pallas import tpu as pltpu

# ---------------- problem sizes (small, synthetic) ----------------
N = 64             # vertices per graph
E = 16             # hyperedges per group
C_IN = 16          # in_channels
C_OUT = 32         # out_channels
NUM_GROUPS = 3     # 'hier', 'co-occurence', 'citation'
E_ALL = NUM_GROUPS * E

CI_AUG = C_IN + 1      # +1 ones column (bias fold)
CO_AUG = C_OUT + 1     # +1 attention-score column
PG = 4                 # graphs packed per grid step

ACT_NEG_SLOPE = 0.01   # default nn.LeakyReLU slope for the output activation
BN_EPS = 1e-5


def gat_kernel(x_ref, w_ref, ht_ref, h_ref, out_ref):
    # x_ref : (PG, N, CI_AUG)   bf16   [X | 1]
    # w_ref : (CI_AUG, CO_AUG)  bf16   [[W_fused | W_fused@w_e], [b_fused | b_fused@w_e]]
    # ht_ref: (PG, E_ALL, N)    bf16   vertex->edge incidence, rows pre-scaled by 1/deg
    # h_ref : (PG, N, E_ALL)    bf16   edge->vertex incidence, cols pre-scaled by a_g
    # out_ref:(PG, N, C_OUT)    f32

    # theta + BN + bias (+ attention column), all PG graphs in one matmul.
    xp = jnp.dot(x_ref[...].reshape(PG * N, CI_AUG), w_ref[...],
                 preferred_element_type=jnp.float32)            # (PG*N, CO_AUG) f32
    xp = xp.astype(jnp.bfloat16).reshape(PG, N, CO_AUG)

    # v2e 'mean' for all 3 groups (1/deg folded into ht rows).
    # Column C_OUT of y is exactly alpha = atten_e(Y) by linearity.
    y = jnp.einsum('gen,gnc->gec', ht_ref[...], xp,
                   preferred_element_type=jnp.float32)           # (PG, E_ALL, CO_AUG) f32

    # LeakyReLU(0.2) then clamp(0,5) == clamp(alpha, 0, 5); dropout is identity (eval).
    s = jnp.clip(y[..., C_OUT:CO_AUG], 0.0, 5.0)                 # (PG, E_ALL, 1) f32

    # e2v 'sum' with per-edge weight s; per-group a_g folded into h columns.
    msg = (s * y[..., :C_OUT]).astype(jnp.bfloat16)              # (PG, E_ALL, C_OUT)
    acc = jnp.einsum('gne,gec->gnc', h_ref[...], msg,
                     preferred_element_type=jnp.float32)         # (PG, N, C_OUT) f32

    # output activation (is_last=False): LeakyReLU slope 0.01
    out_ref[...] = jnp.where(acc >= 0.0, acc, ACT_NEG_SLOPE * acc)


def fold_params(W_theta, b_theta, bn_gamma, bn_beta, bn_mean, bn_var, w_atten_e):
    """Per-layer folding (run once, outside the per-call path)."""
    scale = bn_gamma * jax.lax.rsqrt(bn_var + BN_EPS)            # [1, Cout]
    W_fused = W_theta * scale                                    # [Cin, Cout]
    b_fused = (b_theta - bn_mean) * scale + bn_beta              # [1, Cout]
    w_col = W_fused @ w_atten_e                                  # [Cin, 1]
    b_col = b_fused @ w_atten_e                                  # [1, 1]
    W_aug = jnp.concatenate(
        [jnp.concatenate([W_fused, w_col], axis=1),
         jnp.concatenate([b_fused, b_col], axis=1)], axis=0)     # [Cin+1, Cout+1]
    return W_aug.astype(jnp.bfloat16)


def fold_graphs(X, H, a_params):
    """Per-graph folding (run once per graph batch, outside the per-call path).

    X: [B, N, Cin] f32;  H: [B, G, N, E] 0/1 incidence;  a_params: [G] f32.
    """
    B = X.shape[0]
    X_aug = jnp.concatenate([X, jnp.ones((B, N, 1), X.dtype)], axis=-1)   # [B,N,Cin+1]

    Ht_all = jnp.transpose(H, (0, 1, 3, 2)).reshape(B, E_ALL, N)          # [B,3E,N]
    deg = jnp.sum(Ht_all, axis=-1, keepdims=True)
    inv_deg = 1.0 / jnp.maximum(deg, 1.0)
    Ht_scaled = Ht_all * inv_deg                       # fold v2e 'mean' into rows

    H_all = jnp.transpose(H, (0, 2, 1, 3)).reshape(B, N, E_ALL)           # [B,N,3E]
    a_rep = jnp.repeat(a_params, E).reshape(1, 1, E_ALL)
    H_scaled = H_all * a_rep                           # fold a_g into columns

    return (X_aug.astype(jnp.bfloat16),
            Ht_scaled.astype(jnp.bfloat16),
            H_scaled.astype(jnp.bfloat16))


def gatconv_batched(X_aug, Ht_scaled, H_scaled, W_aug):
    """Jitted per-call path: a single batched pallas_call, PG graphs per step."""
    B = X_aug.shape[0]
    assert B % PG == 0, "batch must be a multiple of PG (pad the batch host-side)"
    grid = (B // PG,)
    return pl.pallas_call(
        gat_kernel,
        out_shape=jax.ShapeDtypeStruct((B, N, C_OUT), jnp.float32),
        grid_spec=pltpu.PrefetchScalarGridSpec(
            num_scalar_prefetch=0,
            grid=grid,
            in_specs=[
                pl.BlockSpec((PG, N, CI_AUG), lambda b: (b, 0, 0)),     # X_aug
                pl.BlockSpec((CI_AUG, CO_AUG), lambda b: (0, 0)),       # W_aug (shared)
                pl.BlockSpec((PG, E_ALL, N), lambda b: (b, 0, 0)),      # Ht (v2e)
                pl.BlockSpec((PG, N, E_ALL), lambda b: (b, 0, 0)),      # H  (e2v)
            ],
            out_specs=pl.BlockSpec((PG, N, C_OUT), lambda b: (b, 0, 0)),
        ),
        compiler_params=pltpu.CompilerParams(
            dimension_semantics=("parallel",)),   # shards steps across v7x TCs
    )(X_aug, W_aug, Ht_scaled, H_scaled)


if __name__ == "__main__":
    key = jax.random.PRNGKey(0)
    ks = jax.random.split(key, 10)

    B = 8  # batch of independent graphs processed in one pallas_call

    # Inputs: per-graph node features and 0/1 incidence matrices per group.
    X = jax.random.normal(ks[0], (B, N, C_IN), dtype=jnp.float32)
    H = (jax.random.uniform(ks[1], (B, NUM_GROUPS, N, E)) < 0.2).astype(jnp.float32)
    H = H.at[:, :, 0, :].set(1.0)   # every hyperedge has >= 1 incident vertex

    # Parameters (PyTorch Linear stores W as [out, in]; we use the transpose
    # so the kernel computes X @ W).
    W_theta = 0.1 * jax.random.normal(ks[2], (C_IN, C_OUT), dtype=jnp.float32)
    b_theta = 0.1 * jax.random.normal(ks[3], (1, C_OUT), dtype=jnp.float32)
    bn_gamma = jnp.ones((1, C_OUT), dtype=jnp.float32)
    bn_beta = jnp.zeros((1, C_OUT), dtype=jnp.float32)
    bn_mean = 0.05 * jax.random.normal(ks[4], (1, C_OUT), dtype=jnp.float32)
    bn_var = jnp.abs(1.0 + 0.1 * jax.random.normal(ks[5], (1, C_OUT))).astype(jnp.float32)
    w_atten_e = 0.1 * jax.random.normal(ks[6], (C_OUT, 1), dtype=jnp.float32)
    a_params = jnp.ones((NUM_GROUPS,), dtype=jnp.float32)   # a1 = a2 = a3 = 1.0

    # One-time folding, hoisted out of the per-call jitted path.
    W_aug = fold_params(W_theta, b_theta, bn_gamma, bn_beta, bn_mean, bn_var, w_atten_e)
    X_aug, Ht_s, H_s = fold_graphs(X, H, a_params)

    fwd = jax.jit(gatconv_batched)
    out = fwd(X_aug, Ht_s, H_s, W_aug)
    jax.block_until_ready(out)

    # The PyTorch module also returns [a1.item(), a2.item(), a3.item()]; we keep
    # the a-parameters as a device array to avoid a device->host sync per call.
    a_arr = a_params

    assert out.shape == (B, N, C_OUT) and out.dtype == jnp.float32
    assert bool(jnp.all(jnp.isfinite(out)))
    assert a_arr.shape == (NUM_GROUPS,)
    print("KERNEL_OK")
</pallas_src>

<mosaic_0001>
module attributes {stable_mosaic.version = 11 : i64} {
  func.func @gat_kernel(%arg0: i32, %arg1: memref<4x64x17xbf16, #tpu.memory_space<vmem>>, %arg2: memref<17x33xbf16, #tpu.memory_space<vmem>>, %arg3: memref<4x48x64xbf16, #tpu.memory_space<vmem>>, %arg4: memref<4x64x48xbf16, #tpu.memory_space<vmem>>, %arg5: memref<4x64x32xf32, #tpu.memory_space<vmem>>) attributes {dimension_semantics = [#tpu.dimension_semantics<parallel>], iteration_bounds = array<i64: 2>, scalar_prefetch = 0 : i64, scratch_operands = 0 : i64, tpu.core_type = #tpu.core_type<tc>, window_params = [{transform_indices = @transform_0, window_bounds = array<i64: 4, 64, 17>}, {pipeline_mode = #tpu.pipeline_mode<synchronous>, transform_indices = @transform_1, window_bounds = array<i64: 17, 33>}, {transform_indices = @transform_2, window_bounds = array<i64: 4, 48, 64>}, {transform_indices = @transform_3, window_bounds = array<i64: 4, 64, 48>}, {transform_indices = @transform_4, window_bounds = array<i64: 4, 64, 32>}]} {
    %c0 = arith.constant 0 : index
    %c0_0 = arith.constant 0 : index
    %c0_1 = arith.constant 0 : index
    %0 = vector.load %arg1[%c0, %c0_0, %c0_1] : memref<4x64x17xbf16, #tpu.memory_space<vmem>>, vector<4x64x17xbf16>
    %1 = vector.shape_cast %0 : vector<4x64x17xbf16> to vector<256x17xbf16>
    %c0_2 = arith.constant 0 : index
    %c0_3 = arith.constant 0 : index
    %2 = vector.load %arg2[%c0_2, %c0_3] : memref<17x33xbf16, #tpu.memory_space<vmem>>, vector<17x33xbf16>
    %cst = arith.constant dense<0.000000e+00> : vector<256x33xf32>
    %3 = tpu.matmul %1, %2, %cst {dimension_numbers = #tpu.dot_dimension_numbers<[1], [0], [0], [1], [0, 0, 1, 1], [], []>} : vector<256x17xbf16>, vector<17x33xbf16>, vector<256x33xf32> -> vector<256x33xf32>
    %4 = arith.truncf %3 : vector<256x33xf32> to vector<256x33xbf16>
    %5 = vector.shape_cast %4 : vector<256x33xbf16> to vector<4x64x33xbf16>
    %c0_4 = arith.constant 0 : index
    %c0_5 = arith.constant 0 : index
    %c0_6 = arith.constant 0 : index
    %6 = vector.load %arg3[%c0_4, %c0_5, %c0_6] : memref<4x48x64xbf16, #tpu.memory_space<vmem>>, vector<4x48x64xbf16>
    "tpu.trace_start"() <{level = 10 : i32, message = "gen,gnc->gec"}> : () -> ()
    %cst_7 = arith.constant dense<0.000000e+00> : vector<4x48x33xf32>
    %7 = tpu.matmul %6, %5, %cst_7 {dimension_numbers = #tpu.dot_dimension_numbers<[2], [1], [1], [2], [0, 0, 0, 1, 1, 2], [0], [0]>} : vector<4x48x64xbf16>, vector<4x64x33xbf16>, vector<4x48x33xf32> -> vector<4x48x33xf32>
    "tpu.trace_stop"() : () -> ()
    %8 = vector.extract_strided_slice %7 {offsets = [0, 0, 32], sizes = [4, 48, 1], strides = [1, 1, 1]} : vector<4x48x33xf32> to vector<4x48x1xf32>
    %cst_8 = arith.constant 0.000000e+00 : f32
    %cst_9 = arith.constant 5.000000e+00 : f32
    %9 = vector.broadcast %cst_8 : f32 to vector<4x48x1xf32>
    %10 = arith.maximumf %9, %8 : vector<4x48x1xf32>
    %11 = vector.broadcast %cst_9 : f32 to vector<4x48x1xf32>
    %12 = arith.minimumf %11, %10 : vector<4x48x1xf32>
    %13 = vector.extract_strided_slice %7 {offsets = [0, 0, 0], sizes = [4, 48, 32], strides = [1, 1, 1]} : vector<4x48x33xf32> to vector<4x48x32xf32>
    %14 = vector.broadcast %12 : vector<4x48x1xf32> to vector<4x48x32xf32>
    %15 = arith.mulf %14, %13 : vector<4x48x32xf32>
    %16 = arith.truncf %15 : vector<4x48x32xf32> to vector<4x48x32xbf16>
    %c0_10 = arith.constant 0 : index
    %c0_11 = arith.constant 0 : index
    %c0_12 = arith.constant 0 : index
    %17 = vector.load %arg4[%c0_10, %c0_11, %c0_12] : memref<4x64x48xbf16, #tpu.memory_space<vmem>>, vector<4x64x48xbf16>
    "tpu.trace_start"() <{level = 10 : i32, message = "gne,gec->gnc"}> : () -> ()
    %cst_13 = arith.constant dense<0.000000e+00> : vector<4x64x32xf32>
    %18 = tpu.matmul %17, %16, %cst_13 {dimension_numbers = #tpu.dot_dimension_numbers<[2], [1], [1], [2], [0, 0, 0, 1, 1, 2], [0], [0]>} : vector<4x64x48xbf16>, vector<4x48x32xbf16>, vector<4x64x32xf32> -> vector<4x64x32xf32>
    %cst_14 = arith.constant 0.000000e+00 : f32
    "tpu.trace_stop"() : () -> ()
    %19 = vector.broadcast %cst_14 : f32 to vector<4x64x32xf32>
    %20 = arith.cmpf oge, %18, %19 : vector<4x64x32xf32>
    %cst_15 = arith.constant 0.00999999977 : f32
    %21 = vector.broadcast %cst_15 : f32 to vector<4x64x32xf32>
    %22 = arith.mulf %21, %18 : vector<4x64x32xf32>
    %23 = arith.select %20, %18, %22 : vector<4x64x32xi1>, vector<4x64x32xf32>
    %c0_16 = arith.constant 0 : index
    %c0_17 = arith.constant 0 : index
    %c0_18 = arith.constant 0 : index
    %24 = vector.load %arg5[%c0_16, %c0_17, %c0_18] : memref<4x64x32xf32, #tpu.memory_space<vmem>>, vector<4x64x32xf32>
    tpu.vector_store %arg5[%c0_16, %c0_17, %c0_18], %23 {strides = array<i32>} : memref<4x64x32xf32, #tpu.memory_space<vmem>>, vector<4x64x32xf32>,
    return
  }
  func.func @transform_0(%arg0: i32) -> (i32, i32, i32) {
    %c0_i32 = arith.constant 0 : i32
    %c0_i32_0 = arith.constant 0 : i32
    %c0_i32_1 = arith.constant 0 : i32
    return %arg0, %c0_i32, %c0_i32_0 : i32, i32, i32
  }
  func.func @transform_1(%arg0: i32) -> (i32, i32) {
    %c0_i32 = arith.constant 0 : i32
    %c0_i32_0 = arith.constant 0 : i32
    %c0_i32_1 = arith.constant 0 : i32
    return %c0_i32, %c0_i32_0 : i32, i32
  }
  func.func @transform_2(%arg0: i32) -> (i32, i32, i32) {
    %c0_i32 = arith.constant 0 : i32
    %c0_i32_0 = arith.constant 0 : i32
    %c0_i32_1 = arith.constant 0 : i32
    return %arg0, %c0_i32, %c0_i32_0 : i32, i32, i32
  }
  func.func @transform_3(%arg0: i32) -> (i32, i32, i32) {
    %c0_i32 = arith.constant 0 : i32
    %c0_i32_0 = arith.constant 0 : i32
    %c0_i32_1 = arith.constant 0 : i32
    return %arg0, %c0_i32, %c0_i32_0 : i32, i32, i32
  }
  func.func @transform_4(%arg0: i32) -> (i32, i32, i32) {
    %c0_i32 = arith.constant 0 : i32
    %c0_i32_0 = arith.constant 0 : i32
    %c0_i32_1 = arith.constant 0 : i32
    return %arg0, %c0_i32, %c0_i32_0 : i32, i32, i32
  }
}

</mosaic_0001>

<llo_original>
// kernel: gatconv_batched.1
$region0: #{gatconv_batched.1}
  #allocation0 [shape = 'u32[]', space=smem, size = 0x4, offset = 0x4, fixed_abs, tag = 'smem constant byte address 0x4 - core index']
  #allocation1 [shape = 'u32[72,128]{1,0:T(1,128)}', space=vmem, size = 0x9000, scoped, tag = 'internal scratch']
  %s0 = inlined_call_operand.vmem [shape: bf16[8,64,17], index: 0, kind: input, shape index: {}]
  %s1 = inlined_call_operand.vmem [shape: bf16[17,33], index: 1, kind: input, shape index: {}]
  %s2 = inlined_call_operand.vmem [shape: bf16[8,48,64], index: 2, kind: input, shape index: {}]
  %s3 = inlined_call_operand.vmem [shape: bf16[8,64,48], index: 3, kind: input, shape index: {}]
  %s4 = inlined_call_operand.vmem [shape: f32[8,64,32], index: 4, kind: output, shape index: {}]
  %s5 = sld [smem:[#allocation0]]
  $region49: #{gatconv_batched.1} parent=0
    _
  %s7 = ssub.s32 1, %s5
  %s8 = scalar_select 0, %s7, %s5
  loop: start=0, step=1, limit=4
  $region2: #{gatconv_batched.1} parent=0 // loop_pre_header
    _
  $region3: #{gatconv_batched.1} parent=0 // loop_header
    %s10 = sphi 0, %s14
    %p11 = scmp.ge.s32.totalorder %s10, 4
    %s20 = sphi 0, %s22
    %s23 = sphi 0, %s20
    %s24 = sphi 0, %s23
    %s40 = sphi 0, %s24
    %s44 = sphi 0, %s44
    %s46 = sphi 0, %s44
    %s47 = sphi 0, %s46
    %s61 = sphi 0, %s47
    %s67 = sphi 0, %s69
    %s70 = sphi 0, %s67
    %s71 = sphi 0, %s70
    %s87 = sphi 0, %s71
    %s93 = sphi 0, %s95
    %s96 = sphi 0, %s93
    %s97 = sphi 0, %s96
    %s113 = sphi 0, %s97
    %s119 = sphi 0, %s121
    %s122 = sphi 0, %s119
    %s123 = sphi 0, %s122
    %s139 = sphi 0, %s123
  $region4: #{gatconv_batched.1} parent=0 // loop_header_branch
    %13 = sbr.rel (%p11) target = $region8
  $region5: #{gatconv_batched.1} parent=0 // loop_body
    %s15 = ssub.s32 %s10, 1
    %s16 = ssub.s32 %s10, 2
    %s17 = sadd.s32 %s10, 1
    %s18 = ssub.s32 %s10, %s17
    %p19 = scmp.eq.s32.totalorder %s18, 0
    %s21 = sadd.s32 %s20, 1
    %s22 = scalar_select %p19, %s20, %s21
    %p25 = pneg %p19
    %p26 = scmp.eq.s32.totalorder %s10, 1
    %p27 = por %p25, %p26
    %p28 = scmp.ne.s32.totalorder %s20, %s23
    %p29 = scmp.eq.s32.totalorder %s10, 0
    %p30 = por %p28, %p29
    %p31 = scmp.ne.s32.totalorder %s20, %s23
    %p32 = scmp.eq.s32.totalorder %s15, 1
    %p33 = por %p31, %p32
    %p34 = scmp.ne.s32.totalorder %s23, %s24
    %p35 = scmp.eq.s32.totalorder %s15, 0
    %p36 = por %p34, %p35
    %p37 = scmp.ne.s32.totalorder %s23, %s24
    %p38 = scmp.eq.s32.totalorder %s16, 1
    %p39 = por %p37, %p38
    %p41 = scmp.ne.s32.totalorder %s24, %s40
    %p42 = scmp.eq.s32.totalorder %s16, 0
    %p43 = por %p41, %p42
    %s45 = sadd.s32 %s44, 1
    %p48 = scmp.eq.s32.totalorder %s10, 1
    %p49 = scmp.ne.s32.totalorder %s44, %s46
    %p50 = scmp.eq.s32.totalorder %s10, 0
    %p51 = por %p49, %p50
    %p52 = scmp.ne.s32.totalorder %s44, %s46
    %p53 = scmp.eq.s32.totalorder %s15, 1
    %p54 = por %p52, %p53
    %p55 = scmp.ne.s32.totalorder %s46, %s47
    %p56 = scmp.eq.s32.totalorder %s15, 0
    %p57 = por %p55, %p56
    %p58 = scmp.ne.s32.totalorder %s46, %s47
    %p59 = scmp.eq.s32.totalorder %s16, 1
    %p60 = por %p58, %p59
    %p62 = scmp.ne.s32.totalorder %s47, %s61
    %p63 = scmp.eq.s32.totalorder %s16, 0
    %p64 = por %p62, %p63
    %s65 = ssub.s32 %s10, %s17
    %p66 = scmp.eq.s32.totalorder %s65, 0
    %s68 = sadd.s32 %s67, 1
    %s69 = scalar_select %p66, %s67, %s68
    %p72 = pneg %p66
    %p73 = scmp.eq.s32.totalorder %s10, 1
    %p74 = por %p72, %p73
    %p75 = scmp.ne.s32.totalorder %s67, %s70
    %p76 = scmp.eq.s32.totalorder %s10, 0
    %p77 = por %p75, %p76
    %p78 = scmp.ne.s32.totalorder %s67, %s70
    %p79 = scmp.eq.s32.totalorder %s15, 1
    %p80 = por %p78, %p79
    %p81 = scmp.ne.s32.totalorder %s70, %s71
    %p82 = scmp.eq.s32.totalorder %s15, 0
    %p83 = por %p81, %p82
    %p84 = scmp.ne.s32.totalorder %s70, %s71
    %p85 = scmp.eq.s32.totalorder %s16, 1
    %p86 = por %p84, %p85
    %p88 = scmp.ne.s32.totalorder %s71, %s87
    %p89 = scmp.eq.s32.totalorder %s16, 0
    %p90 = por %p88, %p89
    %s91 = ssub.s32 %s10, %s17
    %p92 = scmp.eq.s32.totalorder %s91, 0
    %s94 = sadd.s32 %s93, 1
    %s95 = scalar_select %p92, %s93, %s94
    %p98 = pneg %p92
    %p99 = scmp.eq.s32.totalorder %s10, 1
    %p100 = por %p98, %p99
    %p101 = scmp.ne.s32.totalorder %s93, %s96
    %p102 = scmp.eq.s32.totalorder %s10, 0
    %p103 = por %p101, %p102
    %p104 = scmp.ne.s32.totalorder %s93, %s96
    %p105 = scmp.eq.s32.totalorder %s15, 1
    %p106 = por %p104, %p105
    %p107 = scmp.ne.s32.totalorder %s96, %s97
    %p108 = scmp.eq.s32.totalorder %s15, 0
    %p109 = por %p107, %p108
    %p110 = scmp.ne.s32.totalorder %s96, %s97
    %p111 = scmp.eq.s32.totalorder %s16, 1
    %p112 = por %p110, %p111
    %p114 = scmp.ne.s32.totalorder %s97, %s113
    %p115 = scmp.eq.s32.totalorder %s16, 0
    %p116 = por %p114, %p115
    %s117 = ssub.s32 %s10, %s17
    %p118 = scmp.eq.s32.totalorder %s117, 0
    %s120 = sadd.s32 %s119, 1
    %s121 = scalar_select %p118, %s119, %s120
    %p124 = pneg %p118
    %p125 = scmp.eq.s32.totalorder %s10, 1
    %p126 = por %p124, %p125
    %p127 = scmp.ne.s32.totalorder %s119, %s122
    %p128 = scmp.eq.s32.totalorder %s10, 0
    %p129 = por %p127, %p128
    %p130 = scmp.ne.s32.totalorder %s119, %s122
    %p131 = scmp.eq.s32.totalorder %s15, 1
    %p132 = por %p130, %p131
    %p133 = scmp.ne.s32.totalorder %s122, %s123
    %p134 = scmp.eq.s32.totalorder %s15, 0
    %p135 = por %p133, %p134
    %p136 = scmp.ne.s32.totalorder %s122, %s123
    %p137 = scmp.eq.s32.totalorder %s16, 1
    %p138 = por %p136, %p137
    %p140 = scmp.ne.s32.totalorder %s123, %s139
    %p141 = scmp.eq.s32.totalorder %s16, 0
    %p142 = por %p140, %p141
    %p143 = scmp.le.s32.totalorder 1, %s10
    %p144 = scmp.lt.s32.totalorder %s10, 3
    %p145 = pnand %p143, %p144
    %p146 = pneg %p145
    // Predicated region
    $region9: #{gatconv_batched.1} parent=5 // pred_check
      _
    $region10: #{gatconv_batched.1} parent=5 // pred_check_branch
      %148 = sbr.rel (%p145) target = $region12
    $region11: #{gatconv_batched.1} parent=5 // pred_region
      %s149 = ssub.s32 %s10, 1
      // Predicated region
      $region13: #{gatconv_batched.1} parent=11 // pred_check
        %p150 = pneg %p57
      $region14: #{gatconv_batched.1} parent=11 // pred_check_branch
        %152 = sbr.rel (%p150) target = $region16
      $region15: #{gatconv_batched.1} parent=11 // pred_region
        _
      $region16: #{gatconv_batched.1} parent=11 // pred_fallthru
        _
    $region12: #{gatconv_batched.1} parent=5 // pred_fallthru
      _
    %p153 = scmp.lt.s32.totalorder %s10, 2
    // Predicated region
    $region17: #{gatconv_batched.1} parent=5 // pred_check
      %p154 = pneg %p153
    $region18: #{gatconv_batched.1} parent=5 // pred_check_branch
      %156 = sbr.rel (%p154) target = $region20
    $region19: #{gatconv_batched.1} parent=5 // pred_region
      // Predicated region
      $region21: #{gatconv_batched.1} parent=19 // pred_check
        %p157 = pneg %p30
      $region22: #{gatconv_batched.1} parent=19 // pred_check_branch
        %159 = sbr.rel (%p157) target = $region24
      $region23: #{gatconv_batched.1} parent=19 // pred_region
        %s160 = smul.u32 4, %s10
        %p161 = scmp.lt.s32.totalorder %s160, 7
        %s162 = scalar_select %p161, %s160, 7
        %s163 = smul.addr %s162, 8
        %s164 = smul.addr %s163, 4
        %s165 = scalar_lea.vmem %s0, %s164
        %s166 = smul.u32 4, %s10
      $region24: #{gatconv_batched.1} parent=19 // pred_fallthru
        _
      // Predicated region
      $region25: #{gatconv_batched.1} parent=19 // pred_check
        %p167 = pneg %p77
      $region26: #{gatconv_batched.1} parent=19 // pred_check_branch
        %169 = sbr.rel (%p167) target = $region28
      $region27: #{gatconv_batched.1} parent=19 // pred_region
        %s170 = smul.u32 4, %s10
        %p171 = scmp.lt.s32.totalorder %s170, 7
        %s172 = scalar_select %p171, %s170, 7
        %s173 = smul.addr %s172, 6
        %s174 = smul.addr %s173, 4
        %s175 = scalar_lea.vmem %s2, %s174
        %s176 = smul.u32 4, %s10
      $region28: #{gatconv_batched.1} parent=19 // pred_fallthru
        _
      // Predicated region
      $region29: #{gatconv_batched.1} parent=19 // pred_check
        %p177 = pneg %p103
      $region30: #{gatconv_batched.1} parent=19 // pred_check_branch
        %179 = sbr.rel (%p177) target = $region32
      $region31: #{gatconv_batched.1} parent=19 // pred_region
        %s180 = smul.u32 4, %s10
        %p181 = scmp.lt.s32.totalorder %s180, 7
        %s182 = scalar_select %p181, %s180, 7
        %s183 = smul.addr %s182, 8
        %s184 = smul.addr %s183, 4
        %s185 = scalar_lea.vmem %s3, %s184
        %s186 = smul.u32 4, %s10
      $region32: #{gatconv_batched.1} parent=19 // pred_fallthru
        _
    $region20: #{gatconv_batched.1} parent=5 // pred_fallthru
      _
    %p187 = scmp.le.s32.totalorder 1, %s10
    %p188 = scmp.lt.s32.totalorder %s10, 3
    %p189 = pnand %p187, %p188
    %p190 = pneg %p189
    // Predicated region
    $region33: #{gatconv_batched.1} parent=5 // pred_check
      _
    $region34: #{gatconv_batched.1} parent=5 // pred_check_branch
      %192 = sbr.rel (%p189) target = $region36
    $region35: #{gatconv_batched.1} parent=5 // pred_region
      %s193 = ssub.s32 %s10, 1
      %s194 = smul.u32 4, %s15
      %p195 = scmp.lt.s32.totalorder %s194, 7
      %s196 = scalar_select %p195, %s194, 7
      %s197 = smul.addr %s196, 8
      %s198 = smul.addr %s197, 4
      %s199 = scalar_lea.vmem %s0, %s198
      %p200 = pneg %p36
      %p201 = pneg %p33
      %p202 = pneg %p57
      %p203 = pneg %p54
      %s204 = smul.u32 4, %s15
      %p205 = scmp.lt.s32.totalorder %s204, 7
      %s206 = scalar_select %p205, %s204, 7
      %s207 = smul.addr %s206, 6
      %s208 = smul.addr %s207, 4
      %s209 = scalar_lea.vmem %s2, %s208
      %p210 = pneg %p83
      %p211 = pneg %p80
      %s212 = smul.u32 4, %s15
      %p213 = scmp.lt.s32.totalorder %s212, 7
      %s214 = scalar_select %p213, %s212, 7
      %s215 = smul.addr %s214, 8
      %s216 = smul.addr %s215, 4
      %s217 = scalar_lea.vmem %s3, %s216
      %p218 = pneg %p109
      %p219 = pneg %p106
      %p220 = pneg %p135
      %p221 = pneg %p132
      %s222 = smul.u32 4, %s15
      %p223 = scmp.lt.s32.totalorder %s222, 7
      %s224 = scalar_select %p223, %s222, 7
      %s225 = smul.addr %s224, 8
      %s226 = smul.addr %s225, 8
      %s227 = scalar_lea.vmem %s4, %s226
      %s228 = smul.u32 4, %s15
      %p229 = scmp.lt.s32.totalorder %s228, 7
      %s230 = scalar_select %p229, %s228, 7
      %s231 = smul.addr %s230, 8
      %s232 = smul.addr %s231, 4
      %s233 = scalar_lea.vmem %s0, %s232
      %s234 = smul.u32 4, %s15
      %s235 = smul.u32 4, %s15
      %p236 = scmp.lt.s32.totalorder %s235, 7
      %s237 = scalar_select %p236, %s235, 7
      %s238 = smul.addr %s237, 6
      %s239 = smul.addr %s238, 4
      %s240 = scalar_lea.vmem %s2, %s239
      %s241 = smul.u32 4, %s15
      %s242 = smul.u32 4, %s15
      %p243 = scmp.lt.s32.totalorder %s242, 7
      %s244 = scalar_select %p243, %s242, 7
      %s245 = smul.addr %s244, 8
      %s246 = smul.addr %s245, 4
      %s247 = scalar_lea.vmem %s3, %s246
      %s248 = smul.u32 4, %s15
      %s249 = smul.u32 4, %s15
      %p250 = scmp.lt.s32.totalorder %s249, 7
      %s251 = scalar_select %p250, %s249, 7
      %s252 = smul.addr %s251, 8
      %s253 = smul.addr %s252, 8
      %s254 = scalar_lea.vmem %s4, %s253
      %s255 = smul.u32 4, %s15
      %v257 = vld [vmem:[%s233] sm:$0xf]
      %v258 = vld [vmem:[%s233 + $0x4] sm:$0xf]
      %v259 = vld [vmem:[%s233 + $0x8] sm:$0xf]
      %v260 = vld [vmem:[%s233 + $0xc] sm:$0xf]
      %v261 = vld [vmem:[%s233 + $0x10] sm:$0xf]
      %v262 = vld [vmem:[%s233 + $0x14] sm:$0xf]
      %v263 = vld [vmem:[%s233 + $0x18] sm:$0xf]
      %v264 = vld [vmem:[%s233 + $0x1c] sm:$0xf]
      %v265 = vld [vmem:[%s233 + $0x20] sm:$0xf]
      %v266 = vld [vmem:[%s233 + $0x24] sm:$0xf]
      %v267 = vld [vmem:[%s233 + $0x28] sm:$0xf]
      %v268 = vld [vmem:[%s233 + $0x2c] sm:$0xf]
      %v269 = vld [vmem:[%s233 + $0x30] sm:$0xf]
      %v270 = vld [vmem:[%s233 + $0x34] sm:$0xf]
      %v271 = vld [vmem:[%s233 + $0x38] sm:$0xf]
      %v272 = vld [vmem:[%s233 + $0x3c] sm:$0xf]
      %v273 = vld [vmem:[%s233 + $0x40] sm:$0xf]
      %v274 = vld [vmem:[%s233 + $0x44] sm:$0xf]
      %v275 = vld [vmem:[%s233 + $0x48] sm:$0xf]
      %v276 = vld [vmem:[%s233 + $0x4c] sm:$0xf]
      %v277 = vld [vmem:[%s233 + $0x50] sm:$0xf]
      %v278 = vld [vmem:[%s233 + $0x54] sm:$0xf]
      %v279 = vld [vmem:[%s233 + $0x58] sm:$0xf]
      %v280 = vld [vmem:[%s233 + $0x5c] sm:$0xf]
      %v281 = vld [vmem:[%s233 + $0x60] sm:$0xf]
      %v282 = vld [vmem:[%s233 + $0x64] sm:$0xf]
      %v283 = vld [vmem:[%s233 + $0x68] sm:$0xf]
      %v284 = vld [vmem:[%s233 + $0x6c] sm:$0xf]
      %v285 = vld [vmem:[%s233 + $0x70] sm:$0xf]
      %v286 = vld [vmem:[%s233 + $0x74] sm:$0xf]
      %v287 = vld [vmem:[%s233 + $0x78] sm:$0xf]
      %v288 = vld [vmem:[%s233 + $0x7c] sm:$0xf]
      %v289 = vld [vmem:[%s1] sm:$0xf]
      %v290 = vld [vmem:[%s1 + $0x4] sm:$0xf]
      %v291 = vld [vmem:[%s1 + $0x8] sm:$0x1]
      %v324 = vunpack.c.l.b16 %v257
      %v325 = vunpack.c.l.b16 %v258
      %v326 = vunpack.c.l.b16 %v259
      %v327 = vunpack.c.l.b16 %v260
      %v328 = vunpack.c.l.b16 %v261
      %v329 = vunpack.c.l.b16 %v262
      %v330 = vunpack.c.l.b16 %v263
      %v331 = vunpack.c.l.b16 %v264
      %v332 = vunpack.c.l.b16 %v265
      %v333 = vunpack.c.l.b16 %v266
      %v334 = vunpack.c.l.b16 %v267
      %v335 = vunpack.c.l.b16 %v268
      %v336 = vunpack.c.l.b16 %v269
      %v337 = vunpack.c.l.b16 %v270
      %v338 = vunpack.c.l.b16 %v271
      %v339 = vunpack.c.l.b16 %v272
      %v340 = vunpack.c.l.b16 %v273
      %v341 = vunpack.c.l.b16 %v274
      %v342 = vunpack.c.l.b16 %v275
      %v343 = vunpack.c.l.b16 %v276
      %v344 = vunpack.c.l.b16 %v277
      %v345 = vunpack.c.l.b16 %v278
      %v346 = vunpack.c.l.b16 %v279
      %v347 = vunpack.c.l.b16 %v280
      %v348 = vunpack.c.l.b16 %v281
      %v349 = vunpack.c.l.b16 %v282
      %v350 = vunpack.c.l.b16 %v283
      %v351 = vunpack.c.l.b16 %v284
      %v352 = vunpack.c.l.b16 %v285
      %v353 = vunpack.c.l.b16 %v286
      %v354 = vunpack.c.l.b16 %v287
      %v355 = vunpack.c.l.b16 %v288
      %v356 = vpack.c.b16 %v325, %v324
      %v357 = vpack.c.b16 %v327, %v326
      %v358 = vpack.c.b16 %v329, %v328
      %v359 = vpack.c.b16 %v331, %v330
      %v360 = vpack.c.b16 %v333, %v332
      %v361 = vpack.c.b16 %v335, %v334
      %v362 = vpack.c.b16 %v337, %v336
      %v363 = vpack.c.b16 %v339, %v338
      %v364 = vpack.c.b16 %v341, %v340
      %v365 = vpack.c.b16 %v343, %v342
      %v366 = vpack.c.b16 %v345, %v344
      %v367 = vpack.c.b16 %v347, %v346
      %v368 = vpack.c.b16 %v349, %v348
      %v369 = vpack.c.b16 %v351, %v350
      %v370 = vpack.c.b16 %v353, %v352
      %v371 = vpack.c.b16 %v355, %v354
      %v375 = vunpack.c.l.b16 %v289
      %v376 = vunpack.c.l.b16 %v290
      %v377 = vunpack.c.l.b16 %v291
      %v378 = vpack.c.b16 %v376, %v375
      %v379 = vpack.c.b16 %v377, %v377
      %vm381 = vcmask 138240
      %v383 = vsel %vm381, %v356, 0
      %v386 = vsel %vm381, %v357, 0
      %v389 = vsel %vm381, %v358, 0
      %v392 = vsel %vm381, %v359, 0
      %v395 = vsel %vm381, %v360, 0
      %v398 = vsel %vm381, %v361, 0
      %v401 = vsel %vm381, %v362, 0
      %v404 = vsel %vm381, %v363, 0
      %v407 = vsel %vm381, %v364, 0
      %v410 = vsel %vm381, %v365, 0
      %v413 = vsel %vm381, %v366, 0
      %v416 = vsel %vm381, %v367, 0
      %v419 = vsel %vm381, %v368, 0
      %v422 = vsel %vm381, %v369, 0
      %v425 = vsel %vm381, %v370, 0
      %v428 = vsel %vm381, %v371, 0
      %vm430 = vcmask 1040384
      %v431 = vsel 0, 4294967295, 65535
      %v432 = vsel %vm430, %v431, 0
      %v434 = vand.u32 %v379, %v432
      %436 = vmatpush.bf16.msra.mxu0 0
      %437 = vmatpush.bf16.msra.mxu0 0
      %438 = vmatpush.bf16.msra.mxu0 0
      %439 = vmatpush.bf16.msra.mxu0 0
      %440 = vmatpush.bf16.msra.mxu0 0
      %441 = vmatpush.bf16.msra.mxu0 0
      %442 = vmatpush.bf16.msra.mxu0 %v434
      %443 = vmatpush.bf16.msra.mxu0 %v378
      %444 = vmatmul.bf16.gmra.mxu0 %v383
      %v445 = vpop.f32.mrf.mxu0
      %v446 = vadd.f32 0.0, %v445
      %v447 = vpop.f32.mrf.mxu0
      %v448 = vadd.f32 0.0, %v447
      %449 = vmatmul.bf16.gmra.mxu0 %v386
      %v450 = vpop.f32.mrf.mxu0
      %v451 = vadd.f32 0.0, %v450
      %v452 = vpop.f32.mrf.mxu0
      %v453 = vadd.f32 0.0, %v452
      %454 = vmatmul.bf16.gmra.mxu0 %v389
      %v455 = vpop.f32.mrf.mxu0
      %v456 = vadd.f32 0.0, %v455
      %v457 = vpop.f32.mrf.mxu0
      %v458 = vadd.f32 0.0, %v457
      %459 = vmatmul.bf16.gmra.mxu0 %v392
      %v460 = vpop.f32.mrf.mxu0
      %v461 = vadd.f32 0.0, %v460
      %v462 = vpop.f32.mrf.mxu0
      %v463 = vadd.f32 0.0, %v462
      %464 = vmatmul.bf16.gmra.mxu0 %v395
      %v465 = vpop.f32.mrf.mxu0
      %v466 = vadd.f32 0.0, %v465
      %v467 = vpop.f32.mrf.mxu0
      %v468 = vadd.f32 0.0, %v467
      %469 = vmatmul.bf16.gmra.mxu0 %v398
      %v470 = vpop.f32.mrf.mxu0
      %v471 = vadd.f32 0.0, %v470
      %v472 = vpop.f32.mrf.mxu0
      %v473 = vadd.f32 0.0, %v472
      %474 = vmatmul.bf16.gmra.mxu0 %v401
      %v475 = vpop.f32.mrf.mxu0
      %v476 = vadd.f32 0.0, %v475
      %v477 = vpop.f32.mrf.mxu0
      %v478 = vadd.f32 0.0, %v477
      %479 = vmatmul.bf16.gmra.mxu0 %v404
      %v480 = vpop.f32.mrf.mxu0
      %v481 = vadd.f32 0.0, %v480
      %v482 = vpop.f32.mrf.mxu0
      %v483 = vadd.f32 0.0, %v482
      %484 = vmatmul.bf16.gmra.mxu0 %v407
      %v485 = vpop.f32.mrf.mxu0
      %v486 = vadd.f32 0.0, %v485
      %v487 = vpop.f32.mrf.mxu0
      %v488 = vadd.f32 0.0, %v487
      %489 = vmatmul.bf16.gmra.mxu0 %v410
      %v490 = vpop.f32.mrf.mxu0
      %v491 = vadd.f32 0.0, %v490
      %v492 = vpop.f32.mrf.mxu0
      %v493 = vadd.f32 0.0, %v492
      %494 = vmatmul.bf16.gmra.mxu0 %v413
      %v495 = vpop.f32.mrf.mxu0
      %v496 = vadd.f32 0.0, %v495
      %v497 = vpop.f32.mrf.mxu0
      %v498 = vadd.f32 0.0, %v497
      %499 = vmatmul.bf16.gmra.mxu0 %v416
      %v500 = vpop.f32.mrf.mxu0
      %v501 = vadd.f32 0.0, %v500
      %v502 = vpop.f32.mrf.mxu0
      %v503 = vadd.f32 0.0, %v502
      %504 = vmatmul.bf16.gmra.mxu0 %v419
      %v505 = vpop.f32.mrf.mxu0
      %v506 = vadd.f32 0.0, %v505
      %v507 = vpop.f32.mrf.mxu0
      %v508 = vadd.f32 0.0, %v507
      %509 = vmatmul.bf16.gmra.mxu0 %v422
      %v510 = vpop.f32.mrf.mxu0
      %v511 = vadd.f32 0.0, %v510
      %v512 = vpop.f32.mrf.mxu0
      %v513 = vadd.f32 0.0, %v512
      %514 = vmatmul.bf16.gmra.mxu0 %v425
      %v515 = vpop.f32.mrf.mxu0
      %v516 = vadd.f32 0.0, %v515
      %v517 = vpop.f32.mrf.mxu0
      %v518 = vadd.f32 0.0, %v517
      %519 = vmatmul.bf16.gmra.mxu0 %v428
      %v520 = vpop.f32.mrf.mxu0
      %v521 = vadd.f32 0.0, %v520
      %v522 = vpop.f32.mrf.mxu0
      %v523 = vadd.f32 0.0, %v522
      %524 = vdwg.mxu0
      %v525 = vpack.c.bf16 %v446, %v446
      %v526 = vpack.c.bf16 %v448, %v448
      %v527 = vpack.c.bf16 %v451, %v451
      %v528 = vpack.c.bf16 %v453, %v453
      %v529 = vpack.c.bf16 %v456, %v456
      %v530 = vpack.c.bf16 %v458, %v458
      %v531 = vpack.c.bf16 %v461, %v461
      %v532 = vpack.c.bf16 %v463, %v463
      %v533 = vpack.c.bf16 %v466, %v466
      %v534 = vpack.c.bf16 %v468, %v468
      %v535 = vpack.c.bf16 %v471, %v471
      %v536 = vpack.c.bf16 %v473, %v473
      %v537 = vpack.c.bf16 %v476, %v476
      %v538 = vpack.c.bf16 %v478, %v478
      %v539 = vpack.c.bf16 %v481, %v481
      %v540 = vpack.c.bf16 %v483, %v483
      %v541 = vpack.c.bf16 %v486, %v486
      %v542 = vpack.c.bf16 %v488, %v488
      %v543 = vpack.c.bf16 %v491, %v491
      %v544 = vpack.c.bf16 %v493, %v493
      %v545 = vpack.c.bf16 %v496, %v496
      %v546 = vpack.c.bf16 %v498, %v498
      %v547 = vpack.c.bf16 %v501, %v501
      %v548 = vpack.c.bf16 %v503, %v503
      %v549 = vpack.c.bf16 %v506, %v506
      %v550 = vpack.c.bf16 %v508, %v508
      %v551 = vpack.c.bf16 %v511, %v511
      %v552 = vpack.c.bf16 %v513, %v513
      %v553 = vpack.c.bf16 %v516, %v516
      %v554 = vpack.c.bf16 %v518, %v518
      %v555 = vpack.c.bf16 %v521, %v521
      %v556 = vpack.c.bf16 %v523, %v523
      %v557 = vld [vmem:[%s240] sm:$0xf]
      %v558 = vld [vmem:[%s240 + $0x4] sm:$0xf]
      %v559 = vld [vmem:[%s240 + $0x8] sm:$0xf]
      %v560 = vld [vmem:[%s240 + $0xc] sm:$0xf]
      %v561 = vld [vmem:[%s240 + $0x10] sm:$0xf]
      %v562 = vld [vmem:[%s240 + $0x14] sm:$0xf]
      %v563 = vld [vmem:[%s240 + $0x18] sm:$0xf]
      %v564 = vld [vmem:[%s240 + $0x1c] sm:$0xf]
      %v565 = vld [vmem:[%s240 + $0x20] sm:$0xf]
      %v566 = vld [vmem:[%s240 + $0x24] sm:$0xf]
      %v567 = vld [vmem:[%s240 + $0x28] sm:$0xf]
      %v568 = vld [vmem:[%s240 + $0x2c] sm:$0xf]
      %v569 = vld [vmem:[%s240 + $0x30] sm:$0xf]
      %v570 = vld [vmem:[%s240 + $0x34] sm:$0xf]
      %v571 = vld [vmem:[%s240 + $0x38] sm:$0xf]
      %v572 = vld [vmem:[%s240 + $0x3c] sm:$0xf]
      %v573 = vld [vmem:[%s240 + $0x40] sm:$0xf]
      %v574 = vld [vmem:[%s240 + $0x44] sm:$0xf]
      %v575 = vld [vmem:[%s240 + $0x48] sm:$0xf]
      %v576 = vld [vmem:[%s240 + $0x4c] sm:$0xf]
      %v577 = vld [vmem:[%s240 + $0x50] sm:$0xf]
      %v578 = vld [vmem:[%s240 + $0x54] sm:$0xf]
      %v579 = vld [vmem:[%s240 + $0x58] sm:$0xf]
      %v580 = vld [vmem:[%s240 + $0x5c] sm:$0xf]
      %v587 = vunpack.c.l.b16 %v557
      %v588 = vunpack.c.l.b16 %v558
      %v589 = vunpack.c.l.b16 %v559
      %v590 = vunpack.c.l.b16 %v560
      %v591 = vunpack.c.l.b16 %v561
      %v592 = vunpack.c.l.b16 %v562
      %v593 = vpack.c.b16 %v588, %v587
      %v594 = vpack.c.b16 %v590, %v589
      %v595 = vpack.c.b16 %v592, %v591
      %v604 = vunpack.c.l.b16 %v525
      %v605 = vunpack.c.l.b16 %v526
      %v606 = vunpack.c.l.b16 %v527
      %v607 = vunpack.c.l.b16 %v528
      %v608 = vunpack.c.l.b16 %v529
      %v609 = vunpack.c.l.b16 %v530
      %v610 = vunpack.c.l.b16 %v531
      %v611 = vunpack.c.l.b16 %v532
      %v612 = vpack.c.b16 %v605, %v604
      %v613 = vpack.c.b16 %v607, %v606
      %v614 = vpack.c.b16 %v609, %v608
      %v615 = vpack.c.b16 %v611, %v610
      %vm620 = vcmask 523264
      %v622 = vsel %vm620, %v593, 0
      %v625 = vsel %vm620, %v594, 0
      %v628 = vsel %vm620, %v595, 0
      %630 = vmatpush.bf16.msra.mxu0 0
      %631 = vmatpush.bf16.msra.mxu0 0
      %632 = vmatpush.bf16.msra.mxu0 0
      %633 = vmatpush.bf16.msra.mxu0 0
      %634 = vmatpush.bf16.msra.mxu0 %v615
      %635 = vmatpush.bf16.msra.mxu0 %v614
      %636 = vmatpush.bf16.msra.mxu0 %v613
      %637 = vmatpush.bf16.msra.mxu0 %v612
      %638 = vmatmul.bf16.gmra.mxu0 %v622
      %v639 = vpop.f32.mrf.mxu0
      %v640 = vadd.f32 0.0, %v639
      %v641 = vpop.f32.mrf.mxu0
      %v642 = vadd.f32 0.0, %v641
      %643 = vmatmul.bf16.gmra.mxu0 %v625
      %v644 = vpop.f32.mrf.mxu0
      %v645 = vadd.f32 0.0, %v644
      %v646 = vpop.f32.mrf.mxu0
      %v647 = vadd.f32 0.0, %v646
      %648 = vmatmul.bf16.gmra.mxu0 %v628
      %v649 = vpop.f32.mrf.mxu0
      %v650 = vadd.f32 0.0, %v649
      %v651 = vpop.f32.mrf.mxu0
      %v652 = vadd.f32 0.0, %v651
      %653 = vdwg.mxu0
      %v660 = vunpack.c.l.b16 %v563
      %v661 = vunpack.c.l.b16 %v564
      %v662 = vunpack.c.l.b16 %v565
      %v663 = vunpack.c.l.b16 %v566
      %v664 = vunpack.c.l.b16 %v567
      %v665 = vunpack.c.l.b16 %v568
      %v666 = vpack.c.b16 %v661, %v660
      %v667 = vpack.c.b16 %v663, %v662
      %v668 = vpack.c.b16 %v665, %v664
      %v677 = vunpack.c.l.b16 %v533
      %v678 = vunpack.c.l.b16 %v534
      %v679 = vunpack.c.l.b16 %v535
      %v680 = vunpack.c.l.b16 %v536
      %v681 = vunpack.c.l.b16 %v537
      %v682 = vunpack.c.l.b16 %v538
      %v683 = vunpack.c.l.b16 %v539
      %v684 = vunpack.c.l.b16 %v540
      %v685 = vpack.c.b16 %v678, %v677
      %v686 = vpack.c.b16 %v680, %v679
      %v687 = vpack.c.b16 %v682, %v681
      %v688 = vpack.c.b16 %v684, %v683
      %v694 = vsel %vm620, %v666, 0
      %v697 = vsel %vm620, %v667, 0
      %v700 = vsel %vm620, %v668, 0
      %702 = vmatpush.bf16.msra.mxu0 0
      %703 = vmatpush.bf16.msra.mxu0 0
      %704 = vmatpush.bf16.msra.mxu0 0
      %705 = vmatpush.bf16.msra.mxu0 0
      %706 = vmatpush.bf16.msra.mxu0 %v688
      %707 = vmatpush.bf16.msra.mxu0 %v687
      %708 = vmatpush.bf16.msra.mxu0 %v686
      %709 = vmatpush.bf16.msra.mxu0 %v685
      %710 = vmatmul.bf16.gmra.mxu0 %v694
      %v711 = vpop.f32.mrf.mxu0
      %v712 = vadd.f32 0.0, %v711
      %v713 = vpop.f32.mrf.mxu0
      %v714 = vadd.f32 0.0, %v713
      %715 = vmatmul.bf16.gmra.mxu0 %v697
      %v716 = vpop.f32.mrf.mxu0
      %v717 = vadd.f32 0.0, %v716
      %v718 = vpop.f32.mrf.mxu0
      %v719 = vadd.f32 0.0, %v718
      %720 = vmatmul.bf16.gmra.mxu0 %v700
      %v721 = vpop.f32.mrf.mxu0
      %v722 = vadd.f32 0.0, %v721
      %v723 = vpop.f32.mrf.mxu0
      %v724 = vadd.f32 0.0, %v723
      %725 = vdwg.mxu0
      %v732 = vunpack.c.l.b16 %v569
      %v733 = vunpack.c.l.b16 %v570
      %v734 = vunpack.c.l.b16 %v571
      %v735 = vunpack.c.l.b16 %v572
      %v736 = vunpack.c.l.b16 %v573
      %v737 = vunpack.c.l.b16 %v574
      %v738 = vpack.c.b16 %v733, %v732
      %v739 = vpack.c.b16 %v735, %v734
      %v740 = vpack.c.b16 %v737, %v736
      %v749 = vunpack.c.l.b16 %v541
      %v750 = vunpack.c.l.b16 %v542
      %v751 = vunpack.c.l.b16 %v543
      %v752 = vunpack.c.l.b16 %v544
      %v753 = vunpack.c.l.b16 %v545
      %v754 = vunpack.c.l.b16 %v546
      %v755 = vunpack.c.l.b16 %v547
      %v756 = vunpack.c.l.b16 %v548
      %v757 = vpack.c.b16 %v750, %v749
      %v758 = vpack.c.b16 %v752, %v751
      %v759 = vpack.c.b16 %v754, %v753
      %v760 = vpack.c.b16 %v756, %v755
      %v766 = vsel %vm620, %v738, 0
      %v769 = vsel %vm620, %v739, 0
      %v772 = vsel %vm620, %v740, 0
      %774 = vmatpush.bf16.msra.mxu0 0
      %775 = vmatpush.bf16.msra.mxu0 0
      %776 = vmatpush.bf16.msra.mxu0 0
      %777 = vmatpush.bf16.msra.mxu0 0
      %778 = vmatpush.bf16.msra.mxu0 %v760
      %779 = vmatpush.bf16.msra.mxu0 %v759
      %780 = vmatpush.bf16.msra.mxu0 %v758
      %781 = vmatpush.bf16.msra.mxu0 %v757
      %782 = vmatmul.bf16.gmra.mxu0 %v766
      %v783 = vpop.f32.mrf.mxu0
      %v784 = vadd.f32 0.0, %v783
      %v785 = vpop.f32.mrf.mxu0
      %v786 = vadd.f32 0.0, %v785
      %787 = vmatmul.bf16.gmra.mxu0 %v769
      %v788 = vpop.f32.mrf.mxu0
      %v789 = vadd.f32 0.0, %v788
      %v790 = vpop.f32.mrf.mxu0
      %v791 = vadd.f32 0.0, %v790
      %792 = vmatmul.bf16.gmra.mxu0 %v772
      %v793 = vpop.f32.mrf.mxu0
      %v794 = vadd.f32 0.0, %v793
      %v795 = vpop.f32.mrf.mxu0
      %v796 = vadd.f32 0.0, %v795
      %797 = vdwg.mxu0
      %v804 = vunpack.c.l.b16 %v575
      %v805 = vunpack.c.l.b16 %v576
      %v806 = vunpack.c.l.b16 %v577
      %v807 = vunpack.c.l.b16 %v578
      %v808 = vunpack.c.l.b16 %v579
      %v809 = vunpack.c.l.b16 %v580
      %v810 = vpack.c.b16 %v805, %v804
      %v811 = vpack.c.b16 %v807, %v806
      %v812 = vpack.c.b16 %v809, %v808
      %v821 = vunpack.c.l.b16 %v549
      %v822 = vunpack.c.l.b16 %v550
      %v823 = vunpack.c.l.b16 %v551
      %v824 = vunpack.c.l.b16 %v552
      %v825 = vunpack.c.l.b16 %v553
      %v826 = vunpack.c.l.b16 %v554
      %v827 = vunpack.c.l.b16 %v555
      %v828 = vunpack.c.l.b16 %v556
      %v829 = vpack.c.b16 %v822, %v821
      %v830 = vpack.c.b16 %v824, %v823
      %v831 = vpack.c.b16 %v826, %v825
      %v832 = vpack.c.b16 %v828, %v827
      %v838 = vsel %vm620, %v810, 0
      %v841 = vsel %vm620, %v811, 0
      %v844 = vsel %vm620, %v812, 0
      %846 = vmatpush.bf16.msra.mxu0 0
      %847 = vmatpush.bf16.msra.mxu0 0
      %848 = vmatpush.bf16.msra.mxu0 0
      %849 = vmatpush.bf16.msra.mxu0 0
      %850 = vmatpush.bf16.msra.mxu0 %v832
      %851 = vmatpush.bf16.msra.mxu0 %v831
      %852 = vmatpush.bf16.msra.mxu0 %v830
      %853 = vmatpush.bf16.msra.mxu0 %v829
      %854 = vmatmul.bf16.gmra.mxu0 %v838
      %v855 = vpop.f32.mrf.mxu0
      %v856 = vadd.f32 0.0, %v855
      %v857 = vpop.f32.mrf.mxu0
      %v858 = vadd.f32 0.0, %v857
      %859 = vmatmul.bf16.gmra.mxu0 %v841
      %v860 = vpop.f32.mrf.mxu0
      %v861 = vadd.f32 0.0, %v860
      %v862 = vpop.f32.mrf.mxu0
      %v863 = vadd.f32 0.0, %v862
      %864 = vmatmul.bf16.gmra.mxu0 %v844
      %v865 = vpop.f32.mrf.mxu0
      %v866 = vadd.f32 0.0, %v865
      %v867 = vpop.f32.mrf.mxu0
      %v868 = vadd.f32 0.0, %v867
      %869 = vdwg.mxu0
      %v870 = vmax.f32 %v640, 0.0
      %v871 = vmax.f32 %v642, 0.0
      %v872 = vmax.f32 %v645, 0.0
      %v873 = vmax.f32 %v647, 0.0
      %v874 = vmax.f32 %v650, 0.0
      %v875 = vmax.f32 %v652, 0.0
      %v876 = vmax.f32 %v712, 0.0
      %v877 = vmax.f32 %v714, 0.0
      %v878 = vmax.f32 %v717, 0.0
      %v879 = vmax.f32 %v719, 0.0
      %v880 = vmax.f32 %v722, 0.0
      %v881 = vmax.f32 %v724, 0.0
      %v882 = vmax.f32 %v784, 0.0
      %v883 = vmax.f32 %v786, 0.0
      %v884 = vmax.f32 %v789, 0.0
      %v885 = vmax.f32 %v791, 0.0
      %v886 = vmax.f32 %v794, 0.0
      %v887 = vmax.f32 %v796, 0.0
      %v888 = vmax.f32 %v856, 0.0
      %v889 = vmax.f32 %v858, 0.0
      %v890 = vmax.f32 %v861, 0.0
      %v891 = vmax.f32 %v863, 0.0
      %v892 = vmax.f32 %v866, 0.0
      %v893 = vmax.f32 %v868, 0.0
      %v894 = vmin.f32 %v870, 5.0
      %v895 = vmin.f32 %v871, 5.0
      %v896 = vmin.f32 %v872, 5.0
      %v897 = vmin.f32 %v873, 5.0
      %v898 = vmin.f32 %v874, 5.0
      %v899 = vmin.f32 %v875, 5.0
      %v900 = vmin.f32 %v876, 5.0
      %v901 = vmin.f32 %v877, 5.0
      %v902 = vmin.f32 %v878, 5.0
      %v903 = vmin.f32 %v879, 5.0
      %v904 = vmin.f32 %v880, 5.0
      %v905 = vmin.f32 %v881, 5.0
      %v906 = vmin.f32 %v882, 5.0
      %v907 = vmin.f32 %v883, 5.0
      %v908 = vmin.f32 %v884, 5.0
      %v909 = vmin.f32 %v885, 5.0
      %v910 = vmin.f32 %v886, 5.0
      %v911 = vmin.f32 %v887, 5.0
      %v912 = vmin.f32 %v888, 5.0
      %v913 = vmin.f32 %v889, 5.0
      %v914 = vmin.f32 %v890, 5.0
      %v915 = vmin.f32 %v891, 5.0
      %v916 = vmin.f32 %v892, 5.0
      %v917 = vmin.f32 %v893, 5.0
      %919 = vset.pattern.permute.xlu0 32
      %920 = vperm.xlu0 %919, %v894
      %v921 = vpop.permute.xlu0 %920
      %924 = vset.pattern.permute.xlu0 32
      %925 = vperm.xlu0 %924, %v895
      %v926 = vpop.permute.xlu0 %925
      %929 = vset.pattern.permute.xlu0 32
      %930 = vperm.xlu0 %929, %v896
      %v931 = vpop.permute.xlu0 %930
      %934 = vset.pattern.permute.xlu0 32
      %935 = vperm.xlu0 %934, %v897
      %v936 = vpop.permute.xlu0 %935
      %939 = vset.pattern.permute.xlu0 32
      %940 = vperm.xlu0 %939, %v898
      %v941 = vpop.permute.xlu0 %940
      %944 = vset.pattern.permute.xlu0 32
      %945 = vperm.xlu0 %944, %v899
      %v946 = vpop.permute.xlu0 %945
      %949 = vset.pattern.permute.xlu0 32
      %950 = vperm.xlu0 %949, %v900
      %v951 = vpop.permute.xlu0 %950
      %954 = vset.pattern.permute.xlu0 32
      %955 = vperm.xlu0 %954, %v901
      %v956 = vpop.permute.xlu0 %955
      %959 = vset.pattern.permute.xlu0 32
      %960 = vperm.xlu0 %959, %v902
      %v961 = vpop.permute.xlu0 %960
      %964 = vset.pattern.permute.xlu0 32
      %965 = vperm.xlu0 %964, %v903
      %v966 = vpop.permute.xlu0 %965
      %969 = vset.pattern.permute.xlu0 32
      %970 = vperm.xlu0 %969, %v904
      %v971 = vpop.permute.xlu0 %970
      %974 = vset.pattern.permute.xlu0 32
      %975 = vperm.xlu0 %974, %v905
      %v976 = vpop.permute.xlu0 %975
      %979 = vset.pattern.permute.xlu0 32
      %980 = vperm.xlu0 %979, %v906
      %v981 = vpop.permute.xlu0 %980
      %984 = vset.pattern.permute.xlu0 32
      %985 = vperm.xlu0 %984, %v907
      %v986 = vpop.permute.xlu0 %985
      %989 = vset.pattern.permute.xlu0 32
      %990 = vperm.xlu0 %989, %v908
      %v991 = vpop.permute.xlu0 %990
      %994 = vset.pattern.permute.xlu0 32
      %995 = vperm.xlu0 %994, %v909
      %v996 = vpop.permute.xlu0 %995
      %999 = vset.pattern.permute.xlu0 32
      %1000 = vperm.xlu0 %999, %v910
      %v1001 = vpop.permute.xlu0 %1000
      %1004 = vset.pattern.permute.xlu0 32
      %1005 = vperm.xlu0 %1004, %v911
      %v1006 = vpop.permute.xlu0 %1005
      %1009 = vset.pattern.permute.xlu0 32
      %1010 = vperm.xlu0 %1009, %v912
      %v1011 = vpop.permute.xlu0 %1010
      %1014 = vset.pattern.permute.xlu0 32
      %1015 = vperm.xlu0 %1014, %v913
      %v1016 = vpop.permute.xlu0 %1015
      %1019 = vset.pattern.permute.xlu0 32
      %1020 = vperm.xlu0 %1019, %v914
      %v1021 = vpop.permute.xlu0 %1020
      %1024 = vset.pattern.permute.xlu0 32
      %1025 = vperm.xlu0 %1024, %v915
      %v1026 = vpop.permute.xlu0 %1025
      %1029 = vset.pattern.permute.xlu0 32
      %1030 = vperm.xlu0 %1029, %v916
      %v1031 = vpop.permute.xlu0 %1030
      %1034 = vset.pattern.permute.xlu0 32
      %1035 = vperm.xlu0 %1034, %v917
      %v1036 = vpop.permute.xlu0 %1035
      %v1038 = vmul.f32 %v921, %v640
      %v1039 = vmul.f32 %v926, %v642
      %v1040 = vmul.f32 %v931, %v645
      %v1041 = vmul.f32 %v936, %v647
      %v1042 = vmul.f32 %v941, %v650
      %v1043 = vmul.f32 %v946, %v652
      %v1044 = vmul.f32 %v951, %v712
      %v1045 = vmul.f32 %v956, %v714
      %v1046 = vmul.f32 %v961, %v717
      %v1047 = vmul.f32 %v966, %v719
      %v1048 = vmul.f32 %v971, %v722
      %v1049 = vmul.f32 %v976, %v724
      %v1050 = vmul.f32 %v981, %v784
      %v1051 = vmul.f32 %v986, %v786
      %v1052 = vmul.f32 %v991, %v789
      %v1053 = vmul.f32 %v996, %v791
      %v1054 = vmul.f32 %v1001, %v794
      %v1055 = vmul.f32 %v1006, %v796
      %v1056 = vmul.f32 %v1011, %v856
      %v1057 = vmul.f32 %v1016, %v858
      %v1058 = vmul.f32 %v1021, %v861
      %v1059 = vmul.f32 %v1026, %v863
      %v1060 = vmul.f32 %v1031, %v866
      %v1061 = vmul.f32 %v1036, %v868
      %v1062 = vpack.c.bf16 %v1038, %v1038
      %v1063 = vpack.c.bf16 %v1039, %v1039
      %v1064 = vpack.c.bf16 %v1040, %v1040
      %v1065 = vpack.c.bf16 %v1041, %v1041
      %v1066 = vpack.c.bf16 %v1042, %v1042
      %v1067 = vpack.c.bf16 %v1043, %v1043
      %v1068 = vpack.c.bf16 %v1044, %v1044
      %v1069 = vpack.c.bf16 %v1045, %v1045
      %v1070 = vpack.c.bf16 %v1046, %v1046
      %v1071 = vpack.c.bf16 %v1047, %v1047
      %v1072 = vpack.c.bf16 %v1048, %v1048
      %v1073 = vpack.c.bf16 %v1049, %v1049
      %v1074 = vpack.c.bf16 %v1050, %v1050
      %v1075 = vpack.c.bf16 %v1051, %v1051
      %v1076 = vpack.c.bf16 %v1052, %v1052
      %v1077 = vpack.c.bf16 %v1053, %v1053
      %v1078 = vpack.c.bf16 %v1054, %v1054
      %v1079 = vpack.c.bf16 %v1055, %v1055
      %v1080 = vpack.c.bf16 %v1056, %v1056
      %v1081 = vpack.c.bf16 %v1057, %v1057
      %v1082 = vpack.c.bf16 %v1058, %v1058
      %v1083 = vpack.c.bf16 %v1059, %v1059
      %v1084 = vpack.c.bf16 %v1060, %v1060
      %v1085 = vpack.c.bf16 %v1061, %v1061
      %v1086 = vld [vmem:[%s247] sm:$0xf]
      %v1087 = vld [vmem:[%s247 + $0x4] sm:$0xf]
      %v1088 = vld [vmem:[%s247 + $0x8] sm:$0xf]
      %v1089 = vld [vmem:[%s247 + $0xc] sm:$0xf]
      %v1090 = vld [vmem:[%s247 + $0x10] sm:$0xf]
      %v1091 = vld [vmem:[%s247 + $0x14] sm:$0xf]
      %v1092 = vld [vmem:[%s247 + $0x18] sm:$0xf]
      %v1093 = vld [vmem:[%s247 + $0x1c] sm:$0xf]
      %v1094 = vld [vmem:[%s247 + $0x20] sm:$0xf]
      %v1095 = vld [vmem:[%s247 + $0x24] sm:$0xf]
      %v1096 = vld [vmem:[%s247 + $0x28] sm:$0xf]
      %v1097 = vld [vmem:[%s247 + $0x2c] sm:$0xf]
      %v1098 = vld [vmem:[%s247 + $0x30] sm:$0xf]
      %v1099 = vld [vmem:[%s247 + $0x34] sm:$0xf]
      %v1100 = vld [vmem:[%s247 + $0x38] sm:$0xf]
      %v1101 = vld [vmem:[%s247 + $0x3c] sm:$0xf]
      %v1102 = vld [vmem:[%s247 + $0x40] sm:$0xf]
      %v1103 = vld [vmem:[%s247 + $0x44] sm:$0xf]
      %v1104 = vld [vmem:[%s247 + $0x48] sm:$0xf]
      %v1105 = vld [vmem:[%s247 + $0x4c] sm:$0xf]
      %v1106 = vld [vmem:[%s247 + $0x50] sm:$0xf]
      %v1107 = vld [vmem:[%s247 + $0x54] sm:$0xf]
      %v1108 = vld [vmem:[%s247 + $0x58] sm:$0xf]
      %v1109 = vld [vmem:[%s247 + $0x5c] sm:$0xf]
      %v1110 = vld [vmem:[%s247 + $0x60] sm:$0xf]
      %v1111 = vld [vmem:[%s247 + $0x64] sm:$0xf]
      %v1112 = vld [vmem:[%s247 + $0x68] sm:$0xf]
      %v1113 = vld [vmem:[%s247 + $0x6c] sm:$0xf]
      %v1114 = vld [vmem:[%s247 + $0x70] sm:$0xf]
      %v1115 = vld [vmem:[%s247 + $0x74] sm:$0xf]
      %v1116 = vld [vmem:[%s247 + $0x78] sm:$0xf]
      %v1117 = vld [vmem:[%s247 + $0x7c] sm:$0xf]
      %v1126 = vunpack.c.l.b16 %v1086
      %v1127 = vunpack.c.l.b16 %v1087
      %v1128 = vunpack.c.l.b16 %v1088
      %v1129 = vunpack.c.l.b16 %v1089
      %v1130 = vunpack.c.l.b16 %v1090
      %v1131 = vunpack.c.l.b16 %v1091
      %v1132 = vunpack.c.l.b16 %v1092
      %v1133 = vunpack.c.l.b16 %v1093
      %v1134 = vpack.c.b16 %v1127, %v1126
      %v1135 = vpack.c.b16 %v1129, %v1128
      %v1136 = vpack.c.b16 %v1131, %v1130
      %v1137 = vpack.c.b16 %v1133, %v1132
      %v1144 = vunpack.c.l.b16 %v1062
      %v1145 = vunpack.c.l.b16 %v1063
      %v1146 = vunpack.c.l.b16 %v1064
      %v1147 = vunpack.c.l.b16 %v1065
      %v1148 = vunpack.c.l.b16 %v1066
      %v1149 = vunpack.c.l.b16 %v1067
      %v1150 = vpack.c.b16 %v1145, %v1144
      %v1151 = vpack.c.b16 %v1147, %v1146
      %v1152 = vpack.c.b16 %v1149, %v1148
      %vm1156 = vcmask 392192
      %v1158 = vsel %vm1156, %v1134, 0
      %v1161 = vsel %vm1156, %v1135, 0
      %v1164 = vsel %vm1156, %v1136, 0
      %v1167 = vsel %vm1156, %v1137, 0
      %1169 = vmatpush.bf16.msra.mxu0 0
      %1170 = vmatpush.bf16.msra.mxu0 0
      %1171 = vmatpush.bf16.msra.mxu0 0
      %1172 = vmatpush.bf16.msra.mxu0 0
      %1173 = vmatpush.bf16.msra.mxu0 0
      %1174 = vmatpush.bf16.msra.mxu0 %v1152
      %1175 = vmatpush.bf16.msra.mxu0 %v1151
      %1176 = vmatpush.bf16.msra.mxu0 %v1150
      %1177 = vmatmul.bf16.gmra.mxu0 %v1158
      %v1178 = vpop.f32.mrf.mxu0
      %v1179 = vadd.f32 0.0, %v1178
      %v1180 = vpop.f32.mrf.mxu0
      %v1181 = vadd.f32 0.0, %v1180
      %1182 = vmatmul.bf16.gmra.mxu0 %v1161
      %v1183 = vpop.f32.mrf.mxu0
      %v1184 = vadd.f32 0.0, %v1183
      %v1185 = vpop.f32.mrf.mxu0
      %v1186 = vadd.f32 0.0, %v1185
      %1187 = vmatmul.bf16.gmra.mxu0 %v1164
      %v1188 = vpop.f32.mrf.mxu0
      %v1189 = vadd.f32 0.0, %v1188
      %v1190 = vpop.f32.mrf.mxu0
      %v1191 = vadd.f32 0.0, %v1190
      %1192 = vmatmul.bf16.gmra.mxu0 %v1167
      %v1193 = vpop.f32.mrf.mxu0
      %v1194 = vadd.f32 0.0, %v1193
      %v1195 = vpop.f32.mrf.mxu0
      %v1196 = vadd.f32 0.0, %v1195
      %1197 = vdwg.mxu0
      %v1206 = vunpack.c.l.b16 %v1094
      %v1207 = vunpack.c.l.b16 %v1095
      %v1208 = vunpack.c.l.b16 %v1096
      %v1209 = vunpack.c.l.b16 %v1097
      %v1210 = vunpack.c.l.b16 %v1098
      %v1211 = vunpack.c.l.b16 %v1099
      %v1212 = vunpack.c.l.b16 %v1100
      %v1213 = vunpack.c.l.b16 %v1101
      %v1214 = vpack.c.b16 %v1207, %v1206
      %v1215 = vpack.c.b16 %v1209, %v1208
      %v1216 = vpack.c.b16 %v1211, %v1210
      %v1217 = vpack.c.b16 %v1213, %v1212
      %v1224 = vunpack.c.l.b16 %v1068
      %v1225 = vunpack.c.l.b16 %v1069
      %v1226 = vunpack.c.l.b16 %v1070
      %v1227 = vunpack.c.l.b16 %v1071
      %v1228 = vunpack.c.l.b16 %v1072
      %v1229 = vunpack.c.l.b16 %v1073
      %v1230 = vpack.c.b16 %v1225, %v1224
      %v1231 = vpack.c.b16 %v1227, %v1226
      %v1232 = vpack.c.b16 %v1229, %v1228
      %v1237 = vsel %vm1156, %v1214, 0
      %v1240 = vsel %vm1156, %v1215, 0
      %v1243 = vsel %vm1156, %v1216, 0
      %v1246 = vsel %vm1156, %v1217, 0
      %1248 = vmatpush.bf16.msra.mxu0 0
      %1249 = vmatpush.bf16.msra.mxu0 0
      %1250 = vmatpush.bf16.msra.mxu0 0
      %1251 = vmatpush.bf16.msra.mxu0 0
      %1252 = vmatpush.bf16.msra.mxu0 0
      %1253 = vmatpush.bf16.msra.mxu0 %v1232
      %1254 = vmatpush.bf16.msra.mxu0 %v1231
      %1255 = vmatpush.bf16.msra.mxu0 %v1230
      %1256 = vmatmul.bf16.gmra.mxu0 %v1237
      %v1257 = vpop.f32.mrf.mxu0
      %v1258 = vadd.f32 0.0, %v1257
      %v1259 = vpop.f32.mrf.mxu0
      %v1260 = vadd.f32 0.0, %v1259
      %1261 = vmatmul.bf16.gmra.mxu0 %v1240
      %v1262 = vpop.f32.mrf.mxu0
      %v1263 = vadd.f32 0.0, %v1262
      %v1264 = vpop.f32.mrf.mxu0
      %v1265 = vadd.f32 0.0, %v1264
      %1266 = vmatmul.bf16.gmra.mxu0 %v1243
      %v1267 = vpop.f32.mrf.mxu0
      %v1268 = vadd.f32 0.0, %v1267
      %v1269 = vpop.f32.mrf.mxu0
      %v1270 = vadd.f32 0.0, %v1269
      %1271 = vmatmul.bf16.gmra.mxu0 %v1246
      %v1272 = vpop.f32.mrf.mxu0
      %v1273 = vadd.f32 0.0, %v1272
      %v1274 = vpop.f32.mrf.mxu0
      %v1275 = vadd.f32 0.0, %v1274
      %1276 = vdwg.mxu0
      %v1285 = vunpack.c.l.b16 %v1102
      %v1286 = vunpack.c.l.b16 %v1103
      %v1287 = vunpack.c.l.b16 %v1104
      %v1288 = vunpack.c.l.b16 %v1105
      %v1289 = vunpack.c.l.b16 %v1106
      %v1290 = vunpack.c.l.b16 %v1107
      %v1291 = vunpack.c.l.b16 %v1108
      %v1292 = vunpack.c.l.b16 %v1109
      %v1293 = vpack.c.b16 %v1286, %v1285
      %v1294 = vpack.c.b16 %v1288, %v1287
      %v1295 = vpack.c.b16 %v1290, %v1289
      %v1296 = vpack.c.b16 %v1292, %v1291
      %v1303 = vunpack.c.l.b16 %v1074
      %v1304 = vunpack.c.l.b16 %v1075
      %v1305 = vunpack.c.l.b16 %v1076
      %v1306 = vunpack.c.l.b16 %v1077
      %v1307 = vunpack.c.l.b16 %v1078
      %v1308 = vunpack.c.l.b16 %v1079
      %v1309 = vpack.c.b16 %v1304, %v1303
      %v1310 = vpack.c.b16 %v1306, %v1305
      %v1311 = vpack.c.b16 %v1308, %v1307
      %v1316 = vsel %vm1156, %v1293, 0
      %v1319 = vsel %vm1156, %v1294, 0
      %v1322 = vsel %vm1156, %v1295, 0
      %v1325 = vsel %vm1156, %v1296, 0
      %1327 = vmatpush.bf16.msra.mxu0 0
      %1328 = vmatpush.bf16.msra.mxu0 0
      %1329 = vmatpush.bf16.msra.mxu0 0
      %1330 = vmatpush.bf16.msra.mxu0 0
      %1331 = vmatpush.bf16.msra.mxu0 0
      %1332 = vmatpush.bf16.msra.mxu0 %v1311
      %1333 = vmatpush.bf16.msra.mxu0 %v1310
      %1334 = vmatpush.bf16.msra.mxu0 %v1309
      %1335 = vmatmul.bf16.gmra.mxu0 %v1316
      %v1336 = vpop.f32.mrf.mxu0
      %v1337 = vadd.f32 0.0, %v1336
      %v1338 = vpop.f32.mrf.mxu0
      %v1339 = vadd.f32 0.0, %v1338
      %1340 = vmatmul.bf16.gmra.mxu0 %v1319
      %v1341 = vpop.f32.mrf.mxu0
      %v1342 = vadd.f32 0.0, %v1341
      %v1343 = vpop.f32.mrf.mxu0
      %v1344 = vadd.f32 0.0, %v1343
      %1345 = vmatmul.bf16.gmra.mxu0 %v1322
      %v1346 = vpop.f32.mrf.mxu0
      %v1347 = vadd.f32 0.0, %v1346
      %v1348 = vpop.f32.mrf.mxu0
      %v1349 = vadd.f32 0.0, %v1348
      %1350 = vmatmul.bf16.gmra.mxu0 %v1325
      %v1351 = vpop.f32.mrf.mxu0
      %v1352 = vadd.f32 0.0, %v1351
      %v1353 = vpop.f32.mrf.mxu0
      %v1354 = vadd.f32 0.0, %v1353
      %1355 = vdwg.mxu0
      %v1364 = vunpack.c.l.b16 %v1110
      %v1365 = vunpack.c.l.b16 %v1111
      %v1366 = vunpack.c.l.b16 %v1112
      %v1367 = vunpack.c.l.b16 %v1113
      %v1368 = vunpack.c.l.b16 %v1114
      %v1369 = vunpack.c.l.b16 %v1115
      %v1370 = vunpack.c.l.b16 %v1116
      %v1371 = vunpack.c.l.b16 %v1117
      %v1372 = vpack.c.b16 %v1365, %v1364
      %v1373 = vpack.c.b16 %v1367, %v1366
      %v1374 = vpack.c.b16 %v1369, %v1368
      %v1375 = vpack.c.b16 %v1371, %v1370
      %v1382 = vunpack.c.l.b16 %v1080
      %v1383 = vunpack.c.l.b16 %v1081
      %v1384 = vunpack.c.l.b16 %v1082
      %v1385 = vunpack.c.l.b16 %v1083
      %v1386 = vunpack.c.l.b16 %v1084
      %v1387 = vunpack.c.l.b16 %v1085
      %v1388 = vpack.c.b16 %v1383, %v1382
      %v1389 = vpack.c.b16 %v1385, %v1384
      %v1390 = vpack.c.b16 %v1387, %v1386
      %v1395 = vsel %vm1156, %v1372, 0
      %v1398 = vsel %vm1156, %v1373, 0
      %v1401 = vsel %vm1156, %v1374, 0
      %v1404 = vsel %vm1156, %v1375, 0
      %1406 = vmatpush.bf16.msra.mxu0 0
      %1407 = vmatpush.bf16.msra.mxu0 0
      %1408 = vmatpush.bf16.msra.mxu0 0
      %1409 = vmatpush.bf16.msra.mxu0 0
      %1410 = vmatpush.bf16.msra.mxu0 0
      %1411 = vmatpush.bf16.msra.mxu0 %v1390
      %1412 = vmatpush.bf16.msra.mxu0 %v1389
      %1413 = vmatpush.bf16.msra.mxu0 %v1388
      %1414 = vmatmul.bf16.gmra.mxu0 %v1395
      %v1415 = vpop.f32.mrf.mxu0
      %v1416 = vadd.f32 0.0, %v1415
      %v1417 = vpop.f32.mrf.mxu0
      %v1418 = vadd.f32 0.0, %v1417
      %1419 = vmatmul.bf16.gmra.mxu0 %v1398
      %v1420 = vpop.f32.mrf.mxu0
      %v1421 = vadd.f32 0.0, %v1420
      %v1422 = vpop.f32.mrf.mxu0
      %v1423 = vadd.f32 0.0, %v1422
      %1424 = vmatmul.bf16.gmra.mxu0 %v1401
      %v1425 = vpop.f32.mrf.mxu0
      %v1426 = vadd.f32 0.0, %v1425
      %v1427 = vpop.f32.mrf.mxu0
      %v1428 = vadd.f32 0.0, %v1427
      %1429 = vmatmul.bf16.gmra.mxu0 %v1404
      %v1430 = vpop.f32.mrf.mxu0
      %v1431 = vadd.f32 0.0, %v1430
      %v1432 = vpop.f32.mrf.mxu0
      %v1433 = vadd.f32 0.0, %v1432
      %1434 = vdwg.mxu0
      %vm1435 = vcmp.ge.f32.partialorder %v1179, 0.0
      %vm1436 = vcmp.ge.f32.partialorder %v1181, 0.0
      %vm1437 = vcmp.ge.f32.partialorder %v1184, 0.0
      %vm1438 = vcmp.ge.f32.partialorder %v1186, 0.0
      %vm1439 = vcmp.ge.f32.partialorder %v1189, 0.0
      %vm1440 = vcmp.ge.f32.partialorder %v1191, 0.0
      %vm1441 = vcmp.ge.f32.partialorder %v1194, 0.0
      %vm1442 = vcmp.ge.f32.partialorder %v1196, 0.0
      %vm1443 = vcmp.ge.f32.partialorder %v1258, 0.0
      %vm1444 = vcmp.ge.f32.partialorder %v1260, 0.0
      %vm1445 = vcmp.ge.f32.partialorder %v1263, 0.0
      %vm1446 = vcmp.ge.f32.partialorder %v1265, 0.0
      %vm1447 = vcmp.ge.f32.partialorder %v1268, 0.0
      %vm1448 = vcmp.ge.f32.partialorder %v1270, 0.0
      %vm1449 = vcmp.ge.f32.partialorder %v1273, 0.0
      %vm1450 = vcmp.ge.f32.partialorder %v1275, 0.0
      %vm1451 = vcmp.ge.f32.partialorder %v1337, 0.0
      %vm1452 = vcmp.ge.f32.partialorder %v1339, 0.0
      %vm1453 = vcmp.ge.f32.partialorder %v1342, 0.0
      %vm1454 = vcmp.ge.f32.partialorder %v1344, 0.0
      %vm1455 = vcmp.ge.f32.partialorder %v1347, 0.0
      %vm1456 = vcmp.ge.f32.partialorder %v1349, 0.0
      %vm1457 = vcmp.ge.f32.partialorder %v1352, 0.0
      %vm1458 = vcmp.ge.f32.partialorder %v1354, 0.0
      %vm1459 = vcmp.ge.f32.partialorder %v1416, 0.0
      %vm1460 = vcmp.ge.f32.partialorder %v1418, 0.0
      %vm1461 = vcmp.ge.f32.partialorder %v1421, 0.0
      %vm1462 = vcmp.ge.f32.partialorder %v1423, 0.0
      %vm1463 = vcmp.ge.f32.partialorder %v1426, 0.0
      %vm1464 = vcmp.ge.f32.partialorder %v1428, 0.0
      %vm1465 = vcmp.ge.f32.partialorder %v1431, 0.0
      %vm1466 = vcmp.ge.f32.partialorder %v1433, 0.0
      %v1467 = vmul.f32 %v1179, 0.01
      %v1468 = vmul.f32 %v1181, 0.01
      %v1469 = vmul.f32 %v1184, 0.01
      %v1470 = vmul.f32 %v1186, 0.01
      %v1471 = vmul.f32 %v1189, 0.01
      %v1472 = vmul.f32 %v1191, 0.01
      %v1473 = vmul.f32 %v1194, 0.01
      %v1474 = vmul.f32 %v1196, 0.01
      %v1475 = vmul.f32 %v1258, 0.01
      %v1476 = vmul.f32 %v1260, 0.01
      %v1477 = vmul.f32 %v1263, 0.01
      %v1478 = vmul.f32 %v1265, 0.01
      %v1479 = vmul.f32 %v1268, 0.01
      %v1480 = vmul.f32 %v1270, 0.01
      %v1481 = vmul.f32 %v1273, 0.01
      %v1482 = vmul.f32 %v1275, 0.01
      %v1483 = vmul.f32 %v1337, 0.01
      %v1484 = vmul.f32 %v1339, 0.01
      %v1485 = vmul.f32 %v1342, 0.01
      %v1486 = vmul.f32 %v1344, 0.01
      %v1487 = vmul.f32 %v1347, 0.01
      %v1488 = vmul.f32 %v1349, 0.01
      %v1489 = vmul.f32 %v1352, 0.01
      %v1490 = vmul.f32 %v1354, 0.01
      %v1491 = vmul.f32 %v1416, 0.01
      %v1492 = vmul.f32 %v1418, 0.01
      %v1493 = vmul.f32 %v1421, 0.01
      %v1494 = vmul.f32 %v1423, 0.01
      %v1495 = vmul.f32 %v1426, 0.01
      %v1496 = vmul.f32 %v1428, 0.01
      %v1497 = vmul.f32 %v1431, 0.01
      %v1498 = vmul.f32 %v1433, 0.01
      %v1499 = vsel %vm1435, %v1179, %v1467
      %v1500 = vsel %vm1436, %v1181, %v1468
      %v1501 = vsel %vm1437, %v1184, %v1469
      %v1502 = vsel %vm1438, %v1186, %v1470
      %v1503 = vsel %vm1439, %v1189, %v1471
      %v1504 = vsel %vm1440, %v1191, %v1472
      %v1505 = vsel %vm1441, %v1194, %v1473
      %v1506 = vsel %vm1442, %v1196, %v1474
      %v1507 = vsel %vm1443, %v1258, %v1475
      %v1508 = vsel %vm1444, %v1260, %v1476
      %v1509 = vsel %vm1445, %v1263, %v1477
      %v1510 = vsel %vm1446, %v1265, %v1478
      %v1511 = vsel %vm1447, %v1268, %v1479
      %v1512 = vsel %vm1448, %v1270, %v1480
      %v1513 = vsel %vm1449, %v1273, %v1481
      %v1514 = vsel %vm1450, %v1275, %v1482
      %v1515 = vsel %vm1451, %v1337, %v1483
      %v1516 = vsel %vm1452, %v1339, %v1484
      %v1517 = vsel %vm1453, %v1342, %v1485
      %v1518 = vsel %vm1454, %v1344, %v1486
      %v1519 = vsel %vm1455, %v1347, %v1487
      %v1520 = vsel %vm1456, %v1349, %v1488
      %v1521 = vsel %vm1457, %v1352, %v1489
      %v1522 = vsel %vm1458, %v1354, %v1490
      %v1523 = vsel %vm1459, %v1416, %v1491
      %v1524 = vsel %vm1460, %v1418, %v1492
      %v1525 = vsel %vm1461, %v1421, %v1493
      %v1526 = vsel %vm1462, %v1423, %v1494
      %v1527 = vsel %vm1463, %v1426, %v1495
      %v1528 = vsel %vm1464, %v1428, %v1496
      %v1529 = vsel %vm1465, %v1431, %v1497
      %v1530 = vsel %vm1466, %v1433, %v1498
      %vm1531 = vcmask 261120
      %1532 = vst.msk [vmem:[%s254] sm:$0xff] %vm1531, %v1499
      %1533 = vst.msk [vmem:[%s254 + $0x8] sm:$0xff] %vm1531, %v1500
      %1534 = vst.msk [vmem:[%s254 + $0x10] sm:$0xff] %vm1531, %v1501
      %1535 = vst.msk [vmem:[%s254 + $0x18] sm:$0xff] %vm1531, %v1502
      %1536 = vst.msk [vmem:[%s254 + $0x20] sm:$0xff] %vm1531, %v1503
      %1537 = vst.msk [vmem:[%s254 + $0x28] sm:$0xff] %vm1531, %v1504
      %1538 = vst.msk [vmem:[%s254 + $0x30] sm:$0xff] %vm1531, %v1505
      %1539 = vst.msk [vmem:[%s254 + $0x38] sm:$0xff] %vm1531, %v1506
      %1540 = vst.msk [vmem:[%s254 + $0x40] sm:$0xff] %vm1531, %v1507
      %1541 = vst.msk [vmem:[%s254 + $0x48] sm:$0xff] %vm1531, %v1508
      %1542 = vst.msk [vmem:[%s254 + $0x50] sm:$0xff] %vm1531, %v1509
      %1543 = vst.msk [vmem:[%s254 + $0x58] sm:$0xff] %vm1531, %v1510
      %1544 = vst.msk [vmem:[%s254 + $0x60] sm:$0xff] %vm1531, %v1511
      %1545 = vst.msk [vmem:[%s254 + $0x68] sm:$0xff] %vm1531, %v1512
      %1546 = vst.msk [vmem:[%s254 + $0x70] sm:$0xff] %vm1531, %v1513
      %1547 = vst.msk [vmem:[%s254 + $0x78] sm:$0xff] %vm1531, %v1514
      %1548 = vst.msk [vmem:[%s254 + $0x80] sm:$0xff] %vm1531, %v1515
      %1549 = vst.msk [vmem:[%s254 + $0x88] sm:$0xff] %vm1531, %v1516
      %1550 = vst.msk [vmem:[%s254 + $0x90] sm:$0xff] %vm1531, %v1517
      %1551 = vst.msk [vmem:[%s254 + $0x98] sm:$0xff] %vm1531, %v1518
      %1552 = vst.msk [vmem:[%s254 + $0xa0] sm:$0xff] %vm1531, %v1519
      %1553 = vst.msk [vmem:[%s254 + $0xa8] sm:$0xff] %vm1531, %v1520
      %1554 = vst.msk [vmem:[%s254 + $0xb0] sm:$0xff] %vm1531, %v1521
      %1555 = vst.msk [vmem:[%s254 + $0xb8] sm:$0xff] %vm1531, %v1522
      %1556 = vst.msk [vmem:[%s254 + $0xc0] sm:$0xff] %vm1531, %v1523
      %1557 = vst.msk [vmem:[%s254 + $0xc8] sm:$0xff] %vm1531, %v1524
      %1558 = vst.msk [vmem:[%s254 + $0xd0] sm:$0xff] %vm1531, %v1525
      %1559 = vst.msk [vmem:[%s254 + $0xd8] sm:$0xff] %vm1531, %v1526
      %1560 = vst.msk [vmem:[%s254 + $0xe0] sm:$0xff] %vm1531, %v1527
      %1561 = vst.msk [vmem:[%s254 + $0xe8] sm:$0xff] %vm1531, %v1528
      %1562 = vst.msk [vmem:[%s254 + $0xf0] sm:$0xff] %vm1531, %v1529
      %1563 = vst.msk [vmem:[%s254 + $0xf8] sm:$0xff] %vm1531, %v1530
      %s1564 = smul.u32 4, %s15
      %p1565 = scmp.lt.s32.totalorder %s1564, 7
      %s1566 = scalar_select %p1565, %s1564, 7
      %s1567 = smul.addr %s1566, 8
      %s1568 = smul.addr %s1567, 8
      %s1569 = scalar_lea.vmem %s4, %s1568
      // Predicated region
      $region37: #{gatconv_batched.1} parent=35 // pred_check
        %p1570 = pneg %p132
      $region38: #{gatconv_batched.1} parent=35 // pred_check_branch
        %1572 = sbr.rel (%p1570) target = $region40
      $region39: #{gatconv_batched.1} parent=35 // pred_region
        %s1573 = smul.u32 4, %s15
      $region40: #{gatconv_batched.1} parent=35 // pred_fallthru
        _
    $region36: #{gatconv_batched.1} parent=5 // pred_fallthru
      _
    %p1574 = scmp.le.s32.totalorder 2, %s10
    // Predicated region
    $region41: #{gatconv_batched.1} parent=5 // pred_check
      %p1575 = pneg %p1574
    $region42: #{gatconv_batched.1} parent=5 // pred_check_branch
      %1577 = sbr.rel (%p1575) target = $region44
    $region43: #{gatconv_batched.1} parent=5 // pred_region
      %s1578 = ssub.s32 %s10, 2
      // Predicated region
      $region45: #{gatconv_batched.1} parent=43 // pred_check
        %p1579 = pneg %p138
      $region46: #{gatconv_batched.1} parent=43 // pred_check_branch
        %1581 = sbr.rel (%p1579) target = $region48
      $region47: #{gatconv_batched.1} parent=43 // pred_region
        %s1582 = smul.u32 4, %s16
        %p1583 = scmp.lt.s32.totalorder %s1582, 7
        %s1584 = scalar_select %p1583, %s1582, 7
        %s1585 = smul.addr %s1584, 8
        %s1586 = smul.addr %s1585, 8
        %s1587 = scalar_lea.vmem %s4, %s1586
      $region48: #{gatconv_batched.1} parent=43 // pred_fallthru
        _
    $region44: #{gatconv_batched.1} parent=5 // pred_fallthru
      _
  $region6: #{gatconv_batched.1} parent=0 // loop_footer
    %s14 = sadd.s32 1, %s10
  $region7: #{gatconv_batched.1} parent=0 // loop_footer_branch
    %9 = sbr.rel target = $region3
  $region8: #{gatconv_batched.1} parent=0 // loop_exit
    _

</llo_original>
